<compile_context>
chip_gen: v7x
topology: tpu7x:2x2x1
jax: 0.10.0
libtpu: 0.0.40
codegen_flags: <defaults>
</compile_context>

<pallas_src>
import functools

import jax
import jax.numpy as jnp
from jax.experimental import pallas as pl
from jax.experimental.pallas import tpu as pltpu


def _round_up(v, m):
    return ((v + m - 1) // m) * m


def _cdiv(a, b):
    return -(-a // b)


def _sublane(dtype):
    # Sub-32-bit dtypes pack along sublanes: bf16 -> 16 rows, int8/fp8 -> 32.
    return {4: 8, 2: 16, 1: 32}.get(jnp.dtype(dtype).itemsize, 8)


def _default_compute_dtype(x_dtype):
    # bf16 operands (f32 accumulation) are the TPU MXU performance default on
    # v5e/v6e/v7x.  Pass compute_dtype=jnp.float32 for strict f32 numerics.
    if jnp.dtype(x_dtype) == jnp.dtype(jnp.float32):
        return jnp.dtype(jnp.bfloat16)
    return jnp.dtype(x_dtype)


def _pad_dims(out_features, in_features):
    N, K = out_features, in_features
    # 256-aligned N feeds the full 256-wide MXU on v6e/v7x (128 only for tiny N).
    Np = _round_up(N, 256) if N > 128 else _round_up(N, 128)
    # Pad K only when it must be tiled with 128-aligned blocks.
    Kp = K if (K % 128 == 0 or K <= 512) else _round_up(K, 128)
    return Np, Kp


def _pick_tm(M, sublane, cap):
    if M <= cap:
        return _round_up(M, sublane)
    cands = [c for c in (1024, 768, 512, 384, 256, 192, 128)
             if c <= cap and c % sublane == 0]
    # Minimize padded-M work; on ties prefer the larger tile (fewer weight
    # re-streams from HBM -> higher arithmetic intensity per weight byte).
    return min(cands, key=lambda t: (_cdiv(M, t) * t, -t))


def _linear_kernel(x_ref, w_ref, *rest, has_bias):
    # x_ref: (tm, tk)   input-row tile
    # w_ref: (tk, tn)   weight tile in [K, N] layout (N on lanes -> no XLU xpose)
    # b_ref: (1, tn)    f32 bias tile (only if has_bias)
    # o_ref: (tm, tn)   output tile
    # acc  : (tm, tn)   f32 accumulator scratch
    if has_bias:
        b_ref, o_ref, acc_ref = rest
    else:
        b_ref, (o_ref, acc_ref) = None, rest

    k = pl.program_id(2)

    @pl.when(k == 0)
    def _():
        acc_ref[...] = jnp.zeros_like(acc_ref)

    acc_ref[...] += jnp.dot(x_ref[...], w_ref[...],
                            preferred_element_type=jnp.float32)

    @pl.when(k == pl.num_programs(2) - 1)
    def _():
        acc = acc_ref[...]
        if has_bias:
            acc = acc + b_ref[...]          # bias already f32
        o_ref[...] = acc.astype(o_ref.dtype)


def prepare_linear_params(weight, bias=None, compute_dtype=None):
    """One-time prep: pad + cast + transpose the PyTorch [out, in] weight to a
    lane-dense [Kp, Np] MXU operand so the per-call path does no weight HBM
    round trip and no in-kernel transpose.  Returns (w_kn, bias_row, out_features)."""
    N, K = weight.shape
    if compute_dtype is None:
        compute_dtype = _default_compute_dtype(weight.dtype)
    Np, Kp = _pad_dims(N, K)
    w = weight
    if (Np - N) or (Kp - K):
        w = jnp.pad(w, ((0, Np - N), (0, Kp - K)))
    w_kn = jnp.asarray(w.T, dtype=compute_dtype)          # [Kp, Np]
    b_row = None
    if bias is not None:
        b = bias.astype(jnp.float32)                      # bias stays f32
        if Np - N:
            b = jnp.pad(b, ((0, Np - N),))
        b_row = b.reshape(1, Np)
    return w_kn, b_row, N


@functools.partial(jax.jit, static_argnames=("out_features", "weight_buffers"))
def linear_apply(x, w_kn, bias_row=None, *, out_features=None, weight_buffers=2):
    """y = x @ W^T (+ b) with W already prepared as [Kp, Np] by
    prepare_linear_params.  f32 accumulation; output dtype == x.dtype."""
    Kp, Np = w_kn.shape
    if out_features is None:
        out_features = Np
    compute_dtype = w_kn.dtype
    out_dtype = x.dtype
    in_isz = jnp.dtype(compute_dtype).itemsize
    out_isz = jnp.dtype(out_dtype).itemsize

    lead_shape = x.shape[:-1]
    K = x.shape[-1]
    x2d = x.reshape((-1, K))
    M = x2d.shape[0]

    # ---- tile selection ----
    sub = _sublane(compute_dtype)
    tm_cap = 512 if in_isz >= 4 else 1024
    tm = _pick_tm(M, sub, tm_cap)
    Mp = _round_up(M, tm)

    tn = 512 if Np % 512 == 0 else (256 if Np % 256 == 0 else 128)
    tk = Kp if Kp <= 512 else next(t for t in (512, 256, 128) if Kp % t == 0)

    # v7x megacore: keep >= 2 parallel (i, j) tiles when possible.
    if Mp == tm and Np == tn and tn == 512:
        tn = 256

    # ---- pad / cast activations only when actually needed ----
    pad_m, pad_k = Mp - M, Kp - K
    if pad_m or pad_k:
        x2d = jnp.pad(x2d, ((0, pad_m), (0, pad_k)))
    if x2d.dtype != compute_dtype:
        x2d = x2d.astype(compute_dtype)

    has_bias = bias_row is not None
    inputs = [x2d, w_kn]
    wspec_kwargs = {}
    if weight_buffers != 2:
        wspec_kwargs["pipeline_mode"] = pl.Buffered(weight_buffers)
    in_specs = [
        pl.BlockSpec((tm, tk), lambda i, j, k: (i, k)),                  # x tile
        pl.BlockSpec((tk, tn), lambda i, j, k: (k, j), **wspec_kwargs),  # W[K,N] tile
    ]
    if has_bias:
        inputs.append(bias_row)
        in_specs.append(pl.BlockSpec((1, tn), lambda i, j, k: (0, j)))

    grid = (Mp // tm, Np // tn, Kp // tk)

    # VMEM working set: double-buffered x / w / out tiles + f32 accumulator.
    vmem_est = (2 * (tm * tk + tk * tn) * in_isz
                + 2 * tm * tn * out_isz
                + tm * tn * 4
                + (2 * tn * 4 if has_bias else 0))
    # Fits comfortably on v7x's 64 MiB/TC; never exceed ~48 MiB scoped.
    vmem_limit = min(48 * 1024 * 1024, max(32 * 1024 * 1024, int(vmem_est * 2)))

    cost = pl.CostEstimate(
        flops=2 * Mp * Np * Kp,
        transcendentals=0,
        bytes_accessed=int((Mp * Kp * (Np // tn) + Kp * Np * (Mp // tm)) * in_isz
                           + Mp * Np * out_isz),
    )

    out = pl.pallas_call(
        functools.partial(_linear_kernel, has_bias=has_bias),
        out_shape=jax.ShapeDtypeStruct((Mp, Np), out_dtype),
        grid_spec=pltpu.PrefetchScalarGridSpec(
            num_scalar_prefetch=0,
            grid=grid,
            in_specs=in_specs,
            out_specs=pl.BlockSpec((tm, tn), lambda i, j, k: (i, j)),
            scratch_shapes=[pltpu.VMEM((tm, tn), jnp.float32)],
        ),
        compiler_params=pltpu.CompilerParams(
            dimension_semantics=("parallel", "parallel", "arbitrary"),
            vmem_limit_bytes=vmem_limit,
        ),
        cost_estimate=cost,
    )(*inputs)

    if pad_m or (Np - out_features):
        out = out[:M, :out_features]
    return out.reshape(lead_shape + (out_features,))


@functools.partial(jax.jit, static_argnames=("compute_dtype",))
def linear_forward(x, weight, bias=None, compute_dtype=None):
    """Drop-in forward for the PyTorch module (weight in [out, in] layout).

    Prefer prepare_linear_params() + linear_apply() in real models so the
    weight pad/cast/transpose is hoisted out of the per-call path.
    compute_dtype defaults to bf16 operands for f32 inputs (f32 accumulation,
    output keeps x.dtype); pass compute_dtype=jnp.float32 for exact numerics.
    """
    if compute_dtype is None:
        compute_dtype = _default_compute_dtype(x.dtype)
    w_kn, b_row, n_out = prepare_linear_params(weight, bias, compute_dtype)
    return linear_apply(x, w_kn, b_row, out_features=n_out)


def init_linear_params(key, in_features, out_features, bias=True,
                       init_mode="kaiming_normal", init_weight=1.0, init_bias=0.0,
                       dtype=jnp.float32):
    """Deterministic re-implementation of weight_init for the Linear module."""
    kw, kb = jax.random.split(key)

    def _weight_init(k, shape, mode, fan_in, fan_out):
        if mode == "xavier_uniform":
            return jnp.sqrt(6.0 / (fan_in + fan_out)) * (
                jax.random.uniform(k, shape) * 2.0 - 1.0)
        if mode == "xavier_normal":
            return jnp.sqrt(2.0 / (fan_in + fan_out)) * jax.random.normal(k, shape)
        if mode == "kaiming_uniform":
            return jnp.sqrt(3.0 / fan_in) * (jax.random.uniform(k, shape) * 2.0 - 1.0)
        if mode == "kaiming_normal":
            return jnp.sqrt(1.0 / fan_in) * jax.random.normal(k, shape)
        raise ValueError(f'Invalid init mode "{mode}"')

    weight = (_weight_init(kw, (out_features, in_features), init_mode,
                           in_features, out_features) * init_weight).astype(dtype)
    if bias:
        b = (_weight_init(kb, (out_features,), init_mode,
                          in_features, out_features) * init_bias).astype(dtype)
    else:
        b = None
    return weight, b


if __name__ == "__main__":
    key = jax.random.PRNGKey(0)
    k_x1, k_p1, k_x2, k_p2, k_x3, k_p3 = jax.random.split(key, 6)

    # Case 1: small f32 Linear with bias, exact f32 compute path.
    batch, in_features, out_features = 16, 32, 64
    x = jax.random.normal(k_x1, (batch, in_features), dtype=jnp.float32)
    weight, bias = init_linear_params(k_p1, in_features, out_features, bias=True)
    y = jax.block_until_ready(
        linear_forward(x, weight, bias, compute_dtype=jnp.float32))
    y_ref = x @ weight.T + bias[None, :]
    assert y.shape == (batch, out_features)
    assert jnp.allclose(y, y_ref, atol=1e-5, rtol=1e-5)

    # Case 2: leading batch dims, no bias, shapes needing M/N padding (N=200->256).
    x2 = jax.random.normal(k_x2, (2, 5, 160), dtype=jnp.float32)
    w2, _ = init_linear_params(k_p2, 160, 200, bias=False)
    y2 = jax.block_until_ready(
        linear_forward(x2, w2, None, compute_dtype=jnp.float32))
    y2_ref = x2 @ w2.T
    assert y2.shape == (2, 5, 200)
    assert jnp.allclose(y2, y2_ref, atol=1e-4, rtol=1e-4)

    # Case 3: K-streamed accumulator (Kp=1024 -> 2 k-steps) + N tiling
    # (N=384 -> Np=512, megacore split -> tn=256, 2 parallel N tiles).
    x3 = jax.random.normal(k_x3, (8, 1024), dtype=jnp.float32)
    w3, b3 = init_linear_params(k_p3, 1024, 384, bias=True)
    y3 = jax.block_until_ready(
        linear_forward(x3, w3, b3, compute_dtype=jnp.float32))
    y3_ref = x3 @ w3.T + b3[None, :]
    assert y3.shape == (8, 384)
    assert jnp.allclose(y3, y3_ref, atol=1e-4, rtol=1e-4)

    # Case 4: default performance path (bf16 operands, f32 accumulation) via the
    # hoisted prepare + apply API; looser tolerance vs the strict f32 reference.
    w_kn, b_row, n_out = prepare_linear_params(weight, bias)   # bf16 [K, N], padded
    y4 = jax.block_until_ready(linear_apply(x, w_kn, b_row, out_features=n_out))
    assert y4.shape == (batch, out_features) and y4.dtype == x.dtype
    assert jnp.allclose(y4, y_ref, atol=5e-2, rtol=5e-2)

    # Case 5: convenience forward with its bf16 default (explicit opt-out above).
    y5 = jax.block_until_ready(linear_forward(x, weight, bias))
    assert jnp.allclose(y5, y_ref, atol=5e-2, rtol=5e-2)

    print("KERNEL_OK")
</pallas_src>

<mosaic_0001>
module attributes {stable_mosaic.version = 11 : i64} {
  func.func @_linear_kernel(%arg0: i32, %arg1: i32, %arg2: i32, %arg3: memref<16x32xf32, #tpu.memory_space<vmem>>, %arg4: memref<32x128xf32, #tpu.memory_space<vmem>>, %arg5: memref<1x128xf32, #tpu.memory_space<vmem>>, %arg6: memref<16x128xf32, #tpu.memory_space<vmem>>, %arg7: memref<16x128xf32, #tpu.memory_space<vmem>>) attributes {dimension_semantics = [#tpu.dimension_semantics<parallel>, #tpu.dimension_semantics<parallel>, #tpu.dimension_semantics<arbitrary>], iteration_bounds = array<i64: 1, 1, 1>, scalar_prefetch = 0 : i64, scratch_operands = 1 : i64, tpu.core_type = #tpu.core_type<tc>, window_params = [{transform_indices = @transform_0, window_bounds = array<i64: 16, 32>}, {transform_indices = @transform_1, window_bounds = array<i64: 32, 128>}, {transform_indices = @transform_2, window_bounds = array<i64: 1, 128>}, {transform_indices = @transform_3, window_bounds = array<i64: 16, 128>}]} {
    %c0_i32 = arith.constant 0 : i32
    %0 = arith.cmpi eq, %arg2, %c0_i32 : i32
    %1 = arith.extui %0 : i1 to i32
    %c0_i32_0 = arith.constant 0 : i32
    %2 = arith.cmpi ne, %1, %c0_i32_0 : i32
    scf.if %2 {
      %cst_10 = arith.constant 0.000000e+00 : f32
      %12 = vector.broadcast %cst_10 : f32 to vector<16x128xf32>
      %c0_11 = arith.constant 0 : index
      %c0_12 = arith.constant 0 : index
      %13 = vector.load %arg7[%c0_11, %c0_12] : memref<16x128xf32, #tpu.memory_space<vmem>>, vector<16x128xf32>
      tpu.vector_store %arg7[%c0_11, %c0_12], %12 {strides = array<i32>} : memref<16x128xf32, #tpu.memory_space<vmem>>, vector<16x128xf32>,
    } else {
    }
    %c0 = arith.constant 0 : index
    %c0_1 = arith.constant 0 : index
    %3 = vector.load %arg7[%c0, %c0_1] : memref<16x128xf32, #tpu.memory_space<vmem>>, vector<16x128xf32>
    %c0_2 = arith.constant 0 : index
    %c0_3 = arith.constant 0 : index
    %4 = vector.load %arg3[%c0_2, %c0_3] : memref<16x32xf32, #tpu.memory_space<vmem>>, vector<16x32xf32>
    %c0_4 = arith.constant 0 : index
    %c0_5 = arith.constant 0 : index
    %5 = vector.load %arg4[%c0_4, %c0_5] : memref<32x128xf32, #tpu.memory_space<vmem>>, vector<32x128xf32>
    %cst = arith.constant dense<0.000000e+00> : vector<16x128xf32>
    %6 = tpu.matmul %4, %5, %cst {dimension_numbers = #tpu.dot_dimension_numbers<[1], [0], [0], [1], [0, 0, 1, 1], [], []>} : vector<16x32xf32>, vector<32x128xf32>, vector<16x128xf32> -> vector<16x128xf32>
    %7 = arith.addf %3, %6 : vector<16x128xf32>
    %c0_6 = arith.constant 0 : index
    %c0_7 = arith.constant 0 : index
    %8 = vector.load %arg7[%c0_6, %c0_7] : memref<16x128xf32, #tpu.memory_space<vmem>>, vector<16x128xf32>
    tpu.vector_store %arg7[%c0_6, %c0_7], %7 {strides = array<i32>} : memref<16x128xf32, #tpu.memory_space<vmem>>, vector<16x128xf32>,
    %c0_i32_8 = arith.constant 0 : i32
    %9 = arith.cmpi eq, %arg2, %c0_i32_8 : i32
    %10 = arith.extui %9 : i1 to i32
    %c0_i32_9 = arith.constant 0 : i32
    %11 = arith.cmpi ne, %10, %c0_i32_9 : i32
    scf.if %11 {
      %c0_10 = arith.constant 0 : index
      %c0_11 = arith.constant 0 : index
      %12 = vector.load %arg7[%c0_10, %c0_11] : memref<16x128xf32, #tpu.memory_space<vmem>>, vector<16x128xf32>
      %c0_12 = arith.constant 0 : index
      %c0_13 = arith.constant 0 : index
      %13 = vector.load %arg5[%c0_12, %c0_13] : memref<1x128xf32, #tpu.memory_space<vmem>>, vector<1x128xf32>
      %14 = vector.broadcast %13 : vector<1x128xf32> to vector<16x128xf32>
      %15 = arith.addf %12, %14 : vector<16x128xf32>
      %c0_14 = arith.constant 0 : index
      %c0_15 = arith.constant 0 : index
      %16 = vector.load %arg6[%c0_14, %c0_15] : memref<16x128xf32, #tpu.memory_space<vmem>>, vector<16x128xf32>
      tpu.vector_store %arg6[%c0_14, %c0_15], %15 {strides = array<i32>} : memref<16x128xf32, #tpu.memory_space<vmem>>, vector<16x128xf32>,
    } else {
    }
    return
  }
  func.func @transform_0(%arg0: i32, %arg1: i32, %arg2: i32) -> (i32, i32) {
    %c0_i32 = arith.constant 0 : i32
    return %arg0, %arg2 : i32, i32
  }
  func.func @transform_1(%arg0: i32, %arg1: i32, %arg2: i32) -> (i32, i32) {
    %c0_i32 = arith.constant 0 : i32
    return %arg2, %arg1 : i32, i32
  }
  func.func @transform_2(%arg0: i32, %arg1: i32, %arg2: i32) -> (i32, i32) {
    %c0_i32 = arith.constant 0 : i32
    %c0_i32_0 = arith.constant 0 : i32
    return %c0_i32, %arg1 : i32, i32
  }
  func.func @transform_3(%arg0: i32, %arg1: i32, %arg2: i32) -> (i32, i32) {
    %c0_i32 = arith.constant 0 : i32
    return %arg0, %arg1 : i32, i32
  }
}

</mosaic_0001>

<llo_original>
// kernel: linear_apply.1
$region0: #{linear_apply.1}
  #allocation0 [shape = 'u32[]', space=smem, size = 0x4, offset = 0x4, fixed_abs, tag = 'smem constant byte address 0x4 - core index']
  #allocation1 [shape = 'u32[144,128]{1,0:T(1,128)}', space=vmem, size = 0x12000, scoped, tag = 'internal scratch']
  #allocation2 [shape = 'f32[16,128]{1,0:T(8,128)}', space=vmem, size = 0x2000, scoped, tag = 'scratch operand']
  %s0 = inlined_call_operand.hbm [shape: f32[16,32], index: 0, kind: input, shape index: {}]
  %s1 = inlined_call_operand.hbm [shape: f32[32,128], index: 1, kind: input, shape index: {}]
  %s2 = inlined_call_operand.vmem [shape: f32[1,128], index: 2, kind: input, shape index: {}]
  %s3 = inlined_call_operand.hbm [shape: f32[16,128], index: 3, kind: output, shape index: {}]
  %s4 = sld [smem:[#allocation0]]
  $region38: #{linear_apply.1} parent=0
    _
  %s6 = ssub.s32 1, %s4
  %s7 = scalar_select 0, %s6, %s4
  $region1: #{linear_apply.1} parent=0
    #allocation3 [shape = 'u8[8192]{0}', space=vmem, size = 0x2000, scoped, tag = 'input window, operand 0, single buffered']
    #allocation4 [shape = 's32[1]{0}', space=sflag, size = 0x4, scoped, tag = 'scoped memory for linear_apply.1']
    #allocation5 [shape = 's32[1]{0}', space=sflag, size = 0x4, scoped, tag = 'scoped memory for linear_apply.1']
    #allocation6 [shape = 'u8[16384]{0}', space=vmem, size = 0x4000, scoped, tag = 'input window, operand 1, single buffered']
    #allocation7 [shape = 's32[1]{0}', space=sflag, size = 0x4, scoped, tag = 'scoped memory for linear_apply.1']
    #allocation8 [shape = 'u8[8192]{0}', space=vmem, size = 0x2000, scoped, tag = 'output window, operand 0, single buffered']
    %8 = vsyncpa [#allocation4], 0
    %9 = vsyncpa [#allocation7], 0
    %10 = vsyncpa [#allocation5], 0
    // Predicated region
    $region2: #{linear_apply.1} parent=1 // pred_check
      _
    $region3: #{linear_apply.1} parent=1 // pred_check_branch
      %12 = sbr.rel (0) target = $region5
    $region4: #{linear_apply.1} parent=1 // pred_region
      %s14 = ssub.s32 256, 256
      %15 = vsyncadd [#allocation4], %s14
      %s16 = sshll.u32 [#allocation3], 4
      %s17 = int_to_ptr.vmem [resolvable:$true] %s16
      %22 = dma.hbm_to_vmem [thread:$0]  %s0, 256, %s17, [#allocation4], 128, 128, 8
    $region5: #{linear_apply.1} parent=1 // pred_fallthru
      _
    // Predicated region
    $region6: #{linear_apply.1} parent=1 // pred_check
      _
    $region7: #{linear_apply.1} parent=1 // pred_check_branch
      %24 = sbr.rel (0) target = $region9
    $region8: #{linear_apply.1} parent=1 // pred_region
      %s26 = ssub.s32 512, 512
      %27 = vsyncadd [#allocation7], %s26
      %s28 = sshll.u32 [#allocation6], 4
      %s29 = int_to_ptr.vmem [resolvable:$true] %s28
      %34 = dma.hbm_to_vmem [thread:$0]  %s1, 512, %s29, [#allocation7], 128, 128, 8
    $region9: #{linear_apply.1} parent=1 // pred_fallthru
      _
    // Predicated region
    $region10: #{linear_apply.1} parent=1 // pred_check
      _
    $region11: #{linear_apply.1} parent=1 // pred_check_branch
      %36 = sbr.rel (0) target = $region13
    $region12: #{linear_apply.1} parent=1 // pred_region
      _
    $region13: #{linear_apply.1} parent=1 // pred_fallthru
      _
    // Predicated region
    $region14: #{linear_apply.1} parent=1 // pred_check
      _
    $region15: #{linear_apply.1} parent=1 // pred_check_branch
      %38 = sbr.rel (0) target = $region17
    $region16: #{linear_apply.1} parent=1 // pred_region
      %39 = dma.done [#allocation4], 256
    $region17: #{linear_apply.1} parent=1 // pred_fallthru
      _
    // Predicated region
    $region18: #{linear_apply.1} parent=1 // pred_check
      _
    $region19: #{linear_apply.1} parent=1 // pred_check_branch
      %41 = sbr.rel (0) target = $region21
    $region20: #{linear_apply.1} parent=1 // pred_region
      %42 = dma.done [#allocation7], 512
    $region21: #{linear_apply.1} parent=1 // pred_fallthru
      _
    %p43 = scmp.eq.s32.totalorder 0, 0
    // Predicated region
    $region22: #{linear_apply.1} parent=1 // pred_check
      %p44 = pneg %p43
    $region23: #{linear_apply.1} parent=1 // pred_check_branch
      %46 = sbr.rel (%p44) target = $region25
    $region24: #{linear_apply.1} parent=1 // pred_region
      %47 = vst [vmem:[#allocation2] sm:$0xff] 0.0
      %48 = vst [vmem:[#allocation2 + $0x8] sm:$0xff] 0.0
    $region25: #{linear_apply.1} parent=1 // pred_fallthru
      _
    %v49 = vld [vmem:[#allocation2] sm:$0xff]
    %v50 = vld [vmem:[#allocation2 + $0x8] sm:$0xff]
    %v51 = vld [vmem:[#allocation3] sm:$0xff]
    %v52 = vld [vmem:[#allocation3 + $0x8] sm:$0xff]
    %v53 = vld [vmem:[#allocation6] sm:$0xff]
    %v54 = vld [vmem:[#allocation6 + $0x8] sm:$0xff]
    %v55 = vld [vmem:[#allocation6 + $0x10] sm:$0xff]
    %v56 = vld [vmem:[#allocation6 + $0x18] sm:$0xff]
    %vm57 = vcmask 261120
    %v59 = vsel %vm57, %v51, 0
    %v62 = vsel %vm57, %v52, 0
    %64 = vmatprep.subr.mxu0 0.0
    %65 = vmatpush1.msra.mxu0 %v53
    %66 = vmatprep.subr.mxu0 0.0
    %67 = vmatpush1.msra.mxu0 %v54
    %68 = vmatprep.subr.mxu0 0.0
    %69 = vmatpush1.msra.mxu0 %v55
    %70 = vmatprep.subr.mxu0 0.0
    %71 = vmatpush1.msra.mxu0 %v56
    %72 = vmatprep.subr.mxu0 0.0
    %73 = vmatpush1.msra.mxu0 0.0
    %74 = vmatprep.subr.mxu0 0.0
    %75 = vmatpush1.msra.mxu0 0.0
    %76 = vmatprep.subr.mxu0 0.0
    %77 = vmatpush1.msra.mxu0 0.0
    %78 = vmatprep.subr.mxu0 0.0
    %79 = vmatpush1.msra.mxu0 0.0
    %80 = vmatprep.subr.mxu0 0.0
    %81 = vmatpush1.msra.mxu0 0.0
    %82 = vmatprep.subr.mxu0 0.0
    %83 = vmatpush1.msra.mxu0 0.0
    %84 = vmatprep.subr.mxu0 0.0
    %85 = vmatpush1.msra.mxu0 0.0
    %86 = vmatprep.subr.mxu0 0.0
    %87 = vmatpush1.msra.mxu0 0.0
    %88 = vmatprep.subr.mxu0 0.0
    %89 = vmatpush1.msra.mxu0 0.0
    %90 = vmatprep.subr.mxu0 0.0
    %91 = vmatpush1.msra.mxu0 0.0
    %92 = vmatprep.subr.mxu0 0.0
    %93 = vmatpush1.msra.mxu0 0.0
    %94 = vmatprep.subr.mxu0 0.0
    %95 = vmatpush1.msra.mxu0 0.0
    %96 = vmatprep.subr.mxu0 0.0
    %97 = vmatpush1.msra.mxu0 0.0
    %98 = vmatprep.subr.mxu0 0.0
    %99 = vmatpush1.msra.mxu0 0.0
    %100 = vmatprep.subr.mxu0 0.0
    %101 = vmatpush1.msra.mxu0 0.0
    %102 = vmatprep.subr.mxu0 0.0
    %103 = vmatpush1.msra.mxu0 0.0
    %104 = vmatprep.subr.mxu0 0.0
    %105 = vmatpush1.msra.mxu0 0.0
    %106 = vmatprep.subr.mxu0 0.0
    %107 = vmatpush1.msra.mxu0 0.0
    %108 = vmatprep.subr.mxu0 0.0
    %109 = vmatpush1.msra.mxu0 0.0
    %110 = vmatprep.subr.mxu0 0.0
    %111 = vmatpush1.msra.mxu0 0.0
    %112 = vmatprep.subr.mxu0 0.0
    %113 = vmatpush1.msra.mxu0 0.0
    %114 = vmatprep.subr.mxu0 0.0
    %115 = vmatpush1.msra.mxu0 0.0
    %116 = vmatprep.subr.mxu0 0.0
    %117 = vmatpush1.msra.mxu0 0.0
    %118 = vmatprep.subr.mxu0 0.0
    %119 = vmatpush1.msra.mxu0 0.0
    %120 = vmatprep.subr.mxu0 0.0
    %121 = vmatpush1.msra.mxu0 0.0
    %122 = vmatprep.subr.mxu0 0.0
    %123 = vmatpush1.msra.mxu0 0.0
    %124 = vmatprep.subr.mxu0 0.0
    %125 = vmatpush1.msra.mxu0 0.0
    %126 = vmatprep.subr.mxu0 0.0
    %127 = vmatpush1.msra.mxu0 0.0
    %128 = vmatprep.mubr.f32.mxu0 0.0
    %129 = vmatmul.mubr.f32.gmra.mrb[0].mxu0 %v59
    %v130 = vpop.f32.mrb[0].mxu0
    %v131 = vadd.f32 0.0, %v130
    %v132 = vpop.f32.mrb[0].mxu0
    %133 = vmatprep.mubr.f32.mxu0 0.0
    %134 = vmatmul.mubr.f32.gmra.mrb[0].mxu0 %v62
    %v135 = vpop.f32.mrb[0].mxu0
    %v136 = vadd.f32 0.0, %v135
    %v137 = vpop.f32.mrb[0].mxu0
    %138 = vdwg.mxu0
    %v139 = vadd.f32 %v49, %v131
    %v140 = vadd.f32 %v50, %v136
    %141 = vst [vmem:[#allocation2] sm:$0xff] %v139
    %142 = vst [vmem:[#allocation2 + $0x8] sm:$0xff] %v140
    // Predicated region
    $region26: #{linear_apply.1} parent=1 // pred_check
      %p143 = pneg %p43
    $region27: #{linear_apply.1} parent=1 // pred_check_branch
      %145 = sbr.rel (%p143) target = $region29
    $region28: #{linear_apply.1} parent=1 // pred_region
      %v146 = vld [vmem:[#allocation2] sm:$0xff]
      %v147 = vld [vmem:[#allocation2 + $0x8] sm:$0xff]
      %v148 = vld [vmem:[%s2] sm:$0x1]
      %v150 = vlaneseq
      %v151 = vshrl.u32 %v150, 7
      %v152 = vsub.s32 0, %v151
      %v153 = vrot.slane %v148, %v152
      %v155 = vadd.f32 %v146, %v153
      %v156 = vadd.f32 %v147, %v153
      %157 = vst [vmem:[#allocation8] sm:$0xff] %v155
      %158 = vst [vmem:[#allocation8 + $0x8] sm:$0xff] %v156
    $region29: #{linear_apply.1} parent=1 // pred_fallthru
      _
    // Predicated region
    $region30: #{linear_apply.1} parent=1 // pred_check
      _
    $region31: #{linear_apply.1} parent=1 // pred_check_branch
      %160 = sbr.rel (0) target = $region33
    $region32: #{linear_apply.1} parent=1 // pred_region
      %s162 = ssub.s32 256, 256
      %163 = vsyncadd [#allocation5], %s162
      %s164 = sshll.u32 [#allocation8], 4
      %s165 = int_to_ptr.vmem [resolvable:$true] %s164
      %170 = dma.vmem_to_hbm [thread:$0]  %s165, 256, %s3, [#allocation5], 128, 128, 8
    $region33: #{linear_apply.1} parent=1 // pred_fallthru
      _
    // Predicated region
    $region34: #{linear_apply.1} parent=1 // pred_check
      _
    $region35: #{linear_apply.1} parent=1 // pred_check_branch
      %172 = sbr.rel (0) target = $region37
    $region36: #{linear_apply.1} parent=1 // pred_region
      %173 = dma.done [#allocation5], 256
    $region37: #{linear_apply.1} parent=1 // pred_fallthru
      _
    %174 = vsyncpa [#allocation4], 1
    %175 = vsyncpa [#allocation7], 1
    %176 = vsyncpa [#allocation5], 1

</llo_original>
